<compile_context>
chip_gen: v7x
topology: tpu7x:2x2x1
jax: 0.10.0
libtpu: 0.0.40
codegen_flags: <defaults>
</compile_context>

<pallas_src>
import functools

import jax
import jax.numpy as jnp
from jax.experimental import pallas as pl
from jax.experimental.pallas import tpu as pltpu

KB_EMBEDDING_DIM = 100
LANE = 128
SUBLANE = 8
_TILE_T_CAP = 4096                       # raised from 1024 (amortize per-grid-step overhead)
_VMEM_TILE_BUDGET_BYTES = 28 << 20       # tile-sizing budget; safe for v7x's 64 MiB physical VMEM
_VMEM_LIMIT_BYTES = 48 << 20             # explicit scoped limit: > 16/32 MiB defaults, < 64 MiB physical


def _round_up(x, m):
    return (x + m - 1) // m * m


# ------------------------- Pallas kernels -------------------------

def _fused_kb_kernel(xi_ref, xs_ref, kc_ref, wxi_ref, wxs_ref, wkc_ref, b_ref, o_ref):
    # One lane-dense (TILE_T, L_pad) output block holds BOTH heads:
    #   cols [0:Li)     -> intent logits,  cols [Li:Li+Ls) -> slot logits.
    # Packed weights are zero outside their head's column range, so a plain sum of
    # three MXU matmuls produces both heads; the shared knowledge-context tile is
    # loaded from HBM once and contracted once.
    acc = jnp.dot(xi_ref[...], wxi_ref[...], preferred_element_type=jnp.float32)
    acc = acc + jnp.dot(xs_ref[...], wxs_ref[...], preferred_element_type=jnp.float32)
    acc = acc + jnp.dot(kc_ref[...], wkc_ref[...], preferred_element_type=jnp.float32)
    o_ref[...] = (acc + b_ref[...]).astype(o_ref.dtype)


def _fused_plain_kernel(xi_ref, xs_ref, wxi_ref, wxs_ref, b_ref, o_ref):
    acc = jnp.dot(xi_ref[...], wxi_ref[...], preferred_element_type=jnp.float32)
    acc = acc + jnp.dot(xs_ref[...], wxs_ref[...], preferred_element_type=jnp.float32)
    o_ref[...] = (acc + b_ref[...]).astype(o_ref.dtype)


# ------------------------- wrappers -------------------------

def _choose_tile_t(T, in_bytes_per_row, out_bytes_per_row, resident_bytes):
    """Largest token tile (multiple of 8, capped) whose double-buffered input/output tiles
    plus the resident packed weights fit the VMEM budget; prefers >= 2 grid steps."""
    per_row = 2 * (in_bytes_per_row + out_bytes_per_row)      # x2: double-buffered tiles
    avail = max(_VMEM_TILE_BUDGET_BYTES - resident_bytes, per_row * SUBLANE)
    tile = (avail // per_row) // SUBLANE * SUBLANE
    tile = int(max(SUBLANE, min(_TILE_T_CAP, tile)))
    tile = min(tile, _round_up(T, SUBLANE))                   # never larger than the data
    if T > SUBLANE and pl.cdiv(T, tile) < 2:                  # >=2 steps so megacore can shard
        tile = max(SUBLANE, _round_up(pl.cdiv(T, 2), SUBLANE))
    return int(tile)


def _fused_heads_2d(xi, xs, kc, wxi, wki, bi, wxs, wks, bs, knowledge_enabled):
    """xi/xs: [T, D] f32; kc: [T, KB_EMBEDDING_DIM] f32; w*: [in, L]; b*: [L].
    Returns (intent_logits [T, Li] f32, slot_logits [T, Ls] f32)."""
    T, D = xi.shape
    Li, Ls = int(bi.shape[0]), int(bs.shape[0])
    L_tot = Li + Ls
    L_pad = _round_up(L_tot, LANE)
    kb = KB_EMBEDDING_DIM if knowledge_enabled else 0
    f32 = jnp.float32

    in_bpr = (2 * D + kb) * 4                 # bytes/row of token-tiled f32 inputs
    out_bpr = L_pad * 4                       # bytes/row of the single packed f32 output
    resident = (2 * D + kb) * L_pad * 4 + L_pad * 4
    TILE_T = _choose_tile_t(T, in_bpr, out_bpr, resident)
    grid = (pl.cdiv(T, TILE_T),)              # partial edge block; OOB rows masked on writeback

    # Pack both heads' weights / bias column-wise into one lane-dense slab (tiny, one-time).
    wxi_p = jnp.zeros((D, L_pad), f32).at[:, :Li].set(wxi.astype(f32))
    wxs_p = jnp.zeros((D, L_pad), f32).at[:, Li:L_tot].set(wxs.astype(f32))
    b_p = (jnp.zeros((1, L_pad), f32)
           .at[0, :Li].set(bi.astype(f32))
           .at[0, Li:L_tot].set(bs.astype(f32)))

    def row_spec(w):
        # token-tiled: advances with the grid index -> pipelined / double-buffered
        return pl.BlockSpec((TILE_T, w), lambda i: (i, 0))

    def resident_spec(shape):
        # constant index_map -> block stays VMEM-resident across grid steps
        return pl.BlockSpec(shape, lambda i: (0, 0))

    out_shape = jax.ShapeDtypeStruct((T, L_pad), f32)
    out_spec = row_spec(L_pad)

    flops = 2 * T * (2 * D + kb) * L_pad
    bytes_accessed = (T * (2 * D + kb) * 4          # raw f32 activations, streamed once
                      + (2 * D + kb) * L_pad * 4    # resident packed weights
                      + L_pad * 4                   # packed bias
                      + T * L_pad * 4)              # packed f32 logits out
    cost = pl.CostEstimate(flops=flops, transcendentals=0, bytes_accessed=bytes_accessed)
    cparams = pltpu.CompilerParams(dimension_semantics=("parallel",),
                                   vmem_limit_bytes=_VMEM_LIMIT_BYTES)

    if knowledge_enabled:
        wkc_p = (jnp.zeros((KB_EMBEDDING_DIM, L_pad), f32)
                 .at[:, :Li].set(wki.astype(f32))
                 .at[:, Li:L_tot].set(wks.astype(f32)))
        packed = pl.pallas_call(
            _fused_kb_kernel,
            out_shape=out_shape,
            grid=grid,
            in_specs=[row_spec(D), row_spec(D), row_spec(KB_EMBEDDING_DIM),
                      resident_spec((D, L_pad)), resident_spec((D, L_pad)),
                      resident_spec((KB_EMBEDDING_DIM, L_pad)),
                      resident_spec((1, L_pad))],
            out_specs=out_spec,
            compiler_params=cparams,
            cost_estimate=cost,
        )(xi, xs, kc, wxi_p, wxs_p, wkc_p, b_p)
    else:
        packed = pl.pallas_call(
            _fused_plain_kernel,
            out_shape=out_shape,
            grid=grid,
            in_specs=[row_spec(D), row_spec(D),
                      resident_spec((D, L_pad)), resident_spec((D, L_pad)),
                      resident_spec((1, L_pad))],
            out_specs=out_spec,
            compiler_params=cparams,
            cost_estimate=cost,
        )(xi, xs, wxi_p, wxs_p, b_p)

    return packed[:, :Li], packed[:, Li:L_tot]


@functools.partial(jax.jit, static_argnames=("knowledge_enabled",))
def none_decoder_forward(params, intent_features, slot_features, knowledge,
                         knowledge_contexts, knowledge_enabled=True):
    """
    intent_features / slot_features : [B, S, input_dim]
    knowledge / knowledge_contexts  : [B, S, KB_EMBEDDING_DIM]
    returns (intent_logits [B,S,num_intent], slot_logits [B,S,num_slot]), f32.
    NOTE: `knowledge` is unused by the reference forward (only knowledge_contexts is concatenated).
    Dropout (classifier_dropout) is identity at inference time -> no-op here.
    """
    B, S, D = intent_features.shape
    T = B * S
    intent_2d = intent_features.reshape(T, D)
    slot_2d = slot_features.reshape(T, D)
    kc_2d = knowledge_contexts.reshape(T, KB_EMBEDDING_DIM)

    intent_logits, slot_logits = _fused_heads_2d(
        intent_2d, slot_2d, kc_2d,
        params["intent_w_x"], params["intent_w_kc"], params["intent_b"],
        params["slot_w_x"], params["slot_w_kc"], params["slot_b"],
        knowledge_enabled)

    Li = params["intent_b"].shape[0]
    Ls = params["slot_b"].shape[0]
    return intent_logits.reshape(B, S, Li), slot_logits.reshape(B, S, Ls)


def init_params(key, input_dim, num_intent_labels, num_slot_labels, knowledge_enabled):
    """Deterministic synthetic init. Weight layout [in, out] (transpose of torch nn.Linear)."""
    kb = KB_EMBEDDING_DIM if knowledge_enabled else 0
    input_size = input_dim + kb
    k = jax.random.split(key, 4)
    bound = 1.0 / jnp.sqrt(input_size)
    w_intent = jax.random.uniform(k[0], (input_size, num_intent_labels),
                                  minval=-bound, maxval=bound, dtype=jnp.float32)
    b_intent = jax.random.uniform(k[1], (num_intent_labels,),
                                  minval=-bound, maxval=bound, dtype=jnp.float32)
    w_slot = jax.random.uniform(k[2], (input_size, num_slot_labels),
                                minval=-bound, maxval=bound, dtype=jnp.float32)
    b_slot = jax.random.uniform(k[3], (num_slot_labels,),
                                minval=-bound, maxval=bound, dtype=jnp.float32)
    return {
        "intent_w_x": w_intent[:input_dim],
        "intent_w_kc": w_intent[input_dim:] if knowledge_enabled
                       else jnp.zeros((KB_EMBEDDING_DIM, num_intent_labels), jnp.float32),
        "intent_b": b_intent,
        "slot_w_x": w_slot[:input_dim],
        "slot_w_kc": w_slot[input_dim:] if knowledge_enabled
                     else jnp.zeros((KB_EMBEDDING_DIM, num_slot_labels), jnp.float32),
        "slot_b": b_slot,
    }


if __name__ == "__main__":
    # Small config consistent with the module:
    #   args.max_wn_concepts_count=5, args.max_nell_concepts_count=5 -> knowledge_enabled=True
    #   args.classifier_dropout=0.1 (identity at inference)
    B, S, D = 2, 8, 32
    num_intent_labels, num_slot_labels = 7, 11

    key = jax.random.PRNGKey(0)
    kp, k1, k2, k3, k4 = jax.random.split(key, 5)

    params = init_params(kp, D, num_intent_labels, num_slot_labels, True)
    intent_features = jax.random.normal(k1, (B, S, D), dtype=jnp.float32)
    slot_features = jax.random.normal(k2, (B, S, D), dtype=jnp.float32)
    knowledge = jax.random.normal(k3, (B, S, KB_EMBEDDING_DIM), dtype=jnp.float32)
    knowledge_contexts = jax.random.normal(k4, (B, S, KB_EMBEDDING_DIM), dtype=jnp.float32)

    intent_logits, slot_logits = none_decoder_forward(
        params, intent_features, slot_features, knowledge, knowledge_contexts,
        knowledge_enabled=True)
    jax.block_until_ready((intent_logits, slot_logits))

    assert intent_logits.shape == (B, S, num_intent_labels)
    assert slot_logits.shape == (B, S, num_slot_labels)

    # Pure-JAX f32 reference (concat + dense, matching torch semantics).
    xi_ref = jnp.concatenate([intent_features, knowledge_contexts], axis=2)
    xs_ref = jnp.concatenate([slot_features, knowledge_contexts], axis=2)
    wi_ref = jnp.concatenate([params["intent_w_x"], params["intent_w_kc"]], axis=0)
    ws_ref = jnp.concatenate([params["slot_w_x"], params["slot_w_kc"]], axis=0)
    ref_i = xi_ref @ wi_ref + params["intent_b"]
    ref_s = xs_ref @ ws_ref + params["slot_b"]

    # f32 activations/weights in-kernel; tolerance covers default MXU matmul precision.
    assert jnp.allclose(intent_logits, ref_i, atol=6e-2, rtol=6e-2)
    assert jnp.allclose(slot_logits, ref_s, atol=6e-2, rtol=6e-2)

    # Also exercise the no-knowledge path (max concept counts == 0).
    params_plain = init_params(kp, D, num_intent_labels, num_slot_labels, False)
    pi, ps = none_decoder_forward(
        params_plain, intent_features, slot_features, knowledge, knowledge_contexts,
        knowledge_enabled=False)
    jax.block_until_ready((pi, ps))
    ref_pi = intent_features @ params_plain["intent_w_x"] + params_plain["intent_b"]
    ref_ps = slot_features @ params_plain["slot_w_x"] + params_plain["slot_b"]
    assert jnp.allclose(pi, ref_pi, atol=6e-2, rtol=6e-2)
    assert jnp.allclose(ps, ref_ps, atol=6e-2, rtol=6e-2)

    print("KERNEL_OK")
</pallas_src>

<mosaic_0001>
module attributes {stable_mosaic.version = 11 : i64} {
  func.func @_fused_kb_kernel(%arg0: i32, %arg1: memref<8x32xf32, #tpu.memory_space<vmem>>, %arg2: memref<8x32xf32, #tpu.memory_space<vmem>>, %arg3: memref<8x100xf32, #tpu.memory_space<vmem>>, %arg4: memref<32x128xf32, #tpu.memory_space<vmem>>, %arg5: memref<32x128xf32, #tpu.memory_space<vmem>>, %arg6: memref<100x128xf32, #tpu.memory_space<vmem>>, %arg7: memref<1x128xf32, #tpu.memory_space<vmem>>, %arg8: memref<8x128xf32, #tpu.memory_space<vmem>>) attributes {dimension_semantics = [#tpu.dimension_semantics<parallel>], iteration_bounds = array<i64: 2>, scalar_prefetch = 0 : i64, scratch_operands = 0 : i64, tpu.core_type = #tpu.core_type<tc>, window_params = [{transform_indices = @transform_0, window_bounds = array<i64: 8, 32>}, {transform_indices = @transform_1, window_bounds = array<i64: 8, 32>}, {transform_indices = @transform_2, window_bounds = array<i64: 8, 100>}, {pipeline_mode = #tpu.pipeline_mode<synchronous>, transform_indices = @transform_3, window_bounds = array<i64: 32, 128>}, {pipeline_mode = #tpu.pipeline_mode<synchronous>, transform_indices = @transform_4, window_bounds = array<i64: 32, 128>}, {pipeline_mode = #tpu.pipeline_mode<synchronous>, transform_indices = @transform_5, window_bounds = array<i64: 100, 128>}, {pipeline_mode = #tpu.pipeline_mode<synchronous>, transform_indices = @transform_6, window_bounds = array<i64: 1, 128>}, {transform_indices = @transform_7, window_bounds = array<i64: 8, 128>}]} {
    %c0 = arith.constant 0 : index
    %c0_0 = arith.constant 0 : index
    %0 = vector.load %arg1[%c0, %c0_0] : memref<8x32xf32, #tpu.memory_space<vmem>>, vector<8x32xf32>
    %c0_1 = arith.constant 0 : index
    %c0_2 = arith.constant 0 : index
    %1 = vector.load %arg4[%c0_1, %c0_2] : memref<32x128xf32, #tpu.memory_space<vmem>>, vector<32x128xf32>
    %cst = arith.constant dense<0.000000e+00> : vector<8x128xf32>
    %2 = tpu.matmul %0, %1, %cst {dimension_numbers = #tpu.dot_dimension_numbers<[1], [0], [0], [1], [0, 0, 1, 1], [], []>} : vector<8x32xf32>, vector<32x128xf32>, vector<8x128xf32> -> vector<8x128xf32>
    %c0_3 = arith.constant 0 : index
    %c0_4 = arith.constant 0 : index
    %3 = vector.load %arg2[%c0_3, %c0_4] : memref<8x32xf32, #tpu.memory_space<vmem>>, vector<8x32xf32>
    %c0_5 = arith.constant 0 : index
    %c0_6 = arith.constant 0 : index
    %4 = vector.load %arg5[%c0_5, %c0_6] : memref<32x128xf32, #tpu.memory_space<vmem>>, vector<32x128xf32>
    %cst_7 = arith.constant dense<0.000000e+00> : vector<8x128xf32>
    %5 = tpu.matmul %3, %4, %cst_7 {dimension_numbers = #tpu.dot_dimension_numbers<[1], [0], [0], [1], [0, 0, 1, 1], [], []>} : vector<8x32xf32>, vector<32x128xf32>, vector<8x128xf32> -> vector<8x128xf32>
    %6 = arith.addf %2, %5 : vector<8x128xf32>
    %c0_8 = arith.constant 0 : index
    %c0_9 = arith.constant 0 : index
    %7 = vector.load %arg3[%c0_8, %c0_9] : memref<8x100xf32, #tpu.memory_space<vmem>>, vector<8x100xf32>
    %c0_10 = arith.constant 0 : index
    %c0_11 = arith.constant 0 : index
    %8 = vector.load %arg6[%c0_10, %c0_11] : memref<100x128xf32, #tpu.memory_space<vmem>>, vector<100x128xf32>
    %cst_12 = arith.constant dense<0.000000e+00> : vector<8x128xf32>
    %9 = tpu.matmul %7, %8, %cst_12 {dimension_numbers = #tpu.dot_dimension_numbers<[1], [0], [0], [1], [0, 0, 1, 1], [], []>} : vector<8x100xf32>, vector<100x128xf32>, vector<8x128xf32> -> vector<8x128xf32>
    %10 = arith.addf %6, %9 : vector<8x128xf32>
    %c0_13 = arith.constant 0 : index
    %c0_14 = arith.constant 0 : index
    %11 = vector.load %arg7[%c0_13, %c0_14] : memref<1x128xf32, #tpu.memory_space<vmem>>, vector<1x128xf32>
    %12 = vector.broadcast %11 : vector<1x128xf32> to vector<8x128xf32>
    %13 = arith.addf %10, %12 : vector<8x128xf32>
    %c0_15 = arith.constant 0 : index
    %c0_16 = arith.constant 0 : index
    %14 = vector.load %arg8[%c0_15, %c0_16] : memref<8x128xf32, #tpu.memory_space<vmem>>, vector<8x128xf32>
    tpu.vector_store %arg8[%c0_15, %c0_16], %13 {strides = array<i32>} : memref<8x128xf32, #tpu.memory_space<vmem>>, vector<8x128xf32>,
    return
  }
  func.func @transform_0(%arg0: i32) -> (i32, i32) {
    %c0_i32 = arith.constant 0 : i32
    %c0_i32_0 = arith.constant 0 : i32
    return %arg0, %c0_i32 : i32, i32
  }
  func.func @transform_1(%arg0: i32) -> (i32, i32) {
    %c0_i32 = arith.constant 0 : i32
    %c0_i32_0 = arith.constant 0 : i32
    return %arg0, %c0_i32 : i32, i32
  }
  func.func @transform_2(%arg0: i32) -> (i32, i32) {
    %c0_i32 = arith.constant 0 : i32
    %c0_i32_0 = arith.constant 0 : i32
    return %arg0, %c0_i32 : i32, i32
  }
  func.func @transform_3(%arg0: i32) -> (i32, i32) {
    %c0_i32 = arith.constant 0 : i32
    %c0_i32_0 = arith.constant 0 : i32
    %c0_i32_1 = arith.constant 0 : i32
    return %c0_i32, %c0_i32_0 : i32, i32
  }
  func.func @transform_4(%arg0: i32) -> (i32, i32) {
    %c0_i32 = arith.constant 0 : i32
    %c0_i32_0 = arith.constant 0 : i32
    %c0_i32_1 = arith.constant 0 : i32
    return %c0_i32, %c0_i32_0 : i32, i32
  }
  func.func @transform_5(%arg0: i32) -> (i32, i32) {
    %c0_i32 = arith.constant 0 : i32
    %c0_i32_0 = arith.constant 0 : i32
    %c0_i32_1 = arith.constant 0 : i32
    return %c0_i32, %c0_i32_0 : i32, i32
  }
  func.func @transform_6(%arg0: i32) -> (i32, i32) {
    %c0_i32 = arith.constant 0 : i32
    %c0_i32_0 = arith.constant 0 : i32
    %c0_i32_1 = arith.constant 0 : i32
    return %c0_i32, %c0_i32_0 : i32, i32
  }
  func.func @transform_7(%arg0: i32) -> (i32, i32) {
    %c0_i32 = arith.constant 0 : i32
    %c0_i32_0 = arith.constant 0 : i32
    return %arg0, %c0_i32 : i32, i32
  }
}

</mosaic_0001>

<llo_original>
// kernel: none_decoder_forward.1
$region0: #{none_decoder_forward.1}
  #allocation0 [shape = 'u32[]', space=smem, size = 0x4, offset = 0x4, fixed_abs, tag = 'smem constant byte address 0x4 - core index']
  #allocation1 [shape = 'u32[144,128]{1,0:T(1,128)}', space=vmem, size = 0x12000, scoped, tag = 'internal scratch']
  %s0 = inlined_call_operand.vmem [shape: f32[16,32], index: 0, kind: input, shape index: {}]
  %s1 = inlined_call_operand.vmem [shape: f32[16,32], index: 1, kind: input, shape index: {}]
  %s2 = inlined_call_operand.vmem [shape: f32[16,100], index: 2, kind: input, shape index: {}]
  %s3 = inlined_call_operand.vmem [shape: f32[32,128], index: 3, kind: input, shape index: {}]
  %s4 = inlined_call_operand.vmem [shape: f32[32,128], index: 4, kind: input, shape index: {}]
  %s5 = inlined_call_operand.vmem [shape: f32[100,128], index: 5, kind: input, shape index: {}]
  %s6 = inlined_call_operand.vmem [shape: f32[1,128], index: 6, kind: input, shape index: {}]
  %s7 = inlined_call_operand.vmem [shape: f32[16,128], index: 7, kind: output, shape index: {}]
  %s8 = sld [smem:[#allocation0]]
  $region61: #{none_decoder_forward.1} parent=0
    _
  %s10 = ssub.s32 1, %s8
  %s11 = scalar_select 0, %s10, %s8
  loop: start=0, step=1, limit=4
  $region2: #{none_decoder_forward.1} parent=0 // loop_pre_header
    _
  $region3: #{none_decoder_forward.1} parent=0 // loop_header
    %s13 = sphi 0, %s17
    %p14 = scmp.ge.s32.totalorder %s13, 4
    %s23 = sphi 0, %s25
    %s26 = sphi 0, %s23
    %s27 = sphi 0, %s26
    %s43 = sphi 0, %s27
    %s49 = sphi 0, %s51
    %s52 = sphi 0, %s49
    %s53 = sphi 0, %s52
    %s69 = sphi 0, %s53
    %s75 = sphi 0, %s77
    %s78 = sphi 0, %s75
    %s79 = sphi 0, %s78
    %s95 = sphi 0, %s79
    %s99 = sphi 0, %s99
    %s101 = sphi 0, %s99
    %s102 = sphi 0, %s101
    %s116 = sphi 0, %s102
    %s120 = sphi 0, %s120
    %s122 = sphi 0, %s120
    %s123 = sphi 0, %s122
    %s137 = sphi 0, %s123
    %s141 = sphi 0, %s141
    %s143 = sphi 0, %s141
    %s144 = sphi 0, %s143
    %s158 = sphi 0, %s144
    %s162 = sphi 0, %s162
    %s164 = sphi 0, %s162
    %s165 = sphi 0, %s164
    %s179 = sphi 0, %s165
    %s185 = sphi 0, %s187
    %s188 = sphi 0, %s185
    %s189 = sphi 0, %s188
    %s205 = sphi 0, %s189
  $region4: #{none_decoder_forward.1} parent=0 // loop_header_branch
    %16 = sbr.rel (%p14) target = $region8
  $region5: #{none_decoder_forward.1} parent=0 // loop_body
    %s18 = ssub.s32 %s13, 1
    %s19 = ssub.s32 %s13, 2
    %s20 = sadd.s32 %s13, 1
    %s21 = ssub.s32 %s13, %s20
    %p22 = scmp.eq.s32.totalorder %s21, 0
    %s24 = sadd.s32 %s23, 1
    %s25 = scalar_select %p22, %s23, %s24
    %p28 = pneg %p22
    %p29 = scmp.eq.s32.totalorder %s13, 1
    %p30 = por %p28, %p29
    %p31 = scmp.ne.s32.totalorder %s23, %s26
    %p32 = scmp.eq.s32.totalorder %s13, 0
    %p33 = por %p31, %p32
    %p34 = scmp.ne.s32.totalorder %s23, %s26
    %p35 = scmp.eq.s32.totalorder %s18, 1
    %p36 = por %p34, %p35
    %p37 = scmp.ne.s32.totalorder %s26, %s27
    %p38 = scmp.eq.s32.totalorder %s18, 0
    %p39 = por %p37, %p38
    %p40 = scmp.ne.s32.totalorder %s26, %s27
    %p41 = scmp.eq.s32.totalorder %s19, 1
    %p42 = por %p40, %p41
    %p44 = scmp.ne.s32.totalorder %s27, %s43
    %p45 = scmp.eq.s32.totalorder %s19, 0
    %p46 = por %p44, %p45
    %s47 = ssub.s32 %s13, %s20
    %p48 = scmp.eq.s32.totalorder %s47, 0
    %s50 = sadd.s32 %s49, 1
    %s51 = scalar_select %p48, %s49, %s50
    %p54 = pneg %p48
    %p55 = scmp.eq.s32.totalorder %s13, 1
    %p56 = por %p54, %p55
    %p57 = scmp.ne.s32.totalorder %s49, %s52
    %p58 = scmp.eq.s32.totalorder %s13, 0
    %p59 = por %p57, %p58
    %p60 = scmp.ne.s32.totalorder %s49, %s52
    %p61 = scmp.eq.s32.totalorder %s18, 1
    %p62 = por %p60, %p61
    %p63 = scmp.ne.s32.totalorder %s52, %s53
    %p64 = scmp.eq.s32.totalorder %s18, 0
    %p65 = por %p63, %p64
    %p66 = scmp.ne.s32.totalorder %s52, %s53
    %p67 = scmp.eq.s32.totalorder %s19, 1
    %p68 = por %p66, %p67
    %p70 = scmp.ne.s32.totalorder %s53, %s69
    %p71 = scmp.eq.s32.totalorder %s19, 0
    %p72 = por %p70, %p71
    %s73 = ssub.s32 %s13, %s20
    %p74 = scmp.eq.s32.totalorder %s73, 0
    %s76 = sadd.s32 %s75, 1
    %s77 = scalar_select %p74, %s75, %s76
    %p80 = pneg %p74
    %p81 = scmp.eq.s32.totalorder %s13, 1
    %p82 = por %p80, %p81
    %p83 = scmp.ne.s32.totalorder %s75, %s78
    %p84 = scmp.eq.s32.totalorder %s13, 0
    %p85 = por %p83, %p84
    %p86 = scmp.ne.s32.totalorder %s75, %s78
    %p87 = scmp.eq.s32.totalorder %s18, 1
    %p88 = por %p86, %p87
    %p89 = scmp.ne.s32.totalorder %s78, %s79
    %p90 = scmp.eq.s32.totalorder %s18, 0
    %p91 = por %p89, %p90
    %p92 = scmp.ne.s32.totalorder %s78, %s79
    %p93 = scmp.eq.s32.totalorder %s19, 1
    %p94 = por %p92, %p93
    %p96 = scmp.ne.s32.totalorder %s79, %s95
    %p97 = scmp.eq.s32.totalorder %s19, 0
    %p98 = por %p96, %p97
    %s100 = sadd.s32 %s99, 1
    %p103 = scmp.eq.s32.totalorder %s13, 1
    %p104 = scmp.ne.s32.totalorder %s99, %s101
    %p105 = scmp.eq.s32.totalorder %s13, 0
    %p106 = por %p104, %p105
    %p107 = scmp.ne.s32.totalorder %s99, %s101
    %p108 = scmp.eq.s32.totalorder %s18, 1
    %p109 = por %p107, %p108
    %p110 = scmp.ne.s32.totalorder %s101, %s102
    %p111 = scmp.eq.s32.totalorder %s18, 0
    %p112 = por %p110, %p111
    %p113 = scmp.ne.s32.totalorder %s101, %s102
    %p114 = scmp.eq.s32.totalorder %s19, 1
    %p115 = por %p113, %p114
    %p117 = scmp.ne.s32.totalorder %s102, %s116
    %p118 = scmp.eq.s32.totalorder %s19, 0
    %p119 = por %p117, %p118
    %s121 = sadd.s32 %s120, 1
    %p124 = scmp.eq.s32.totalorder %s13, 1
    %p125 = scmp.ne.s32.totalorder %s120, %s122
    %p126 = scmp.eq.s32.totalorder %s13, 0
    %p127 = por %p125, %p126
    %p128 = scmp.ne.s32.totalorder %s120, %s122
    %p129 = scmp.eq.s32.totalorder %s18, 1
    %p130 = por %p128, %p129
    %p131 = scmp.ne.s32.totalorder %s122, %s123
    %p132 = scmp.eq.s32.totalorder %s18, 0
    %p133 = por %p131, %p132
    %p134 = scmp.ne.s32.totalorder %s122, %s123
    %p135 = scmp.eq.s32.totalorder %s19, 1
    %p136 = por %p134, %p135
    %p138 = scmp.ne.s32.totalorder %s123, %s137
    %p139 = scmp.eq.s32.totalorder %s19, 0
    %p140 = por %p138, %p139
    %s142 = sadd.s32 %s141, 1
    %p145 = scmp.eq.s32.totalorder %s13, 1
    %p146 = scmp.ne.s32.totalorder %s141, %s143
    %p147 = scmp.eq.s32.totalorder %s13, 0
    %p148 = por %p146, %p147
    %p149 = scmp.ne.s32.totalorder %s141, %s143
    %p150 = scmp.eq.s32.totalorder %s18, 1
    %p151 = por %p149, %p150
    %p152 = scmp.ne.s32.totalorder %s143, %s144
    %p153 = scmp.eq.s32.totalorder %s18, 0
    %p154 = por %p152, %p153
    %p155 = scmp.ne.s32.totalorder %s143, %s144
    %p156 = scmp.eq.s32.totalorder %s19, 1
    %p157 = por %p155, %p156
    %p159 = scmp.ne.s32.totalorder %s144, %s158
    %p160 = scmp.eq.s32.totalorder %s19, 0
    %p161 = por %p159, %p160
    %s163 = sadd.s32 %s162, 1
    %p166 = scmp.eq.s32.totalorder %s13, 1
    %p167 = scmp.ne.s32.totalorder %s162, %s164
    %p168 = scmp.eq.s32.totalorder %s13, 0
    %p169 = por %p167, %p168
    %p170 = scmp.ne.s32.totalorder %s162, %s164
    %p171 = scmp.eq.s32.totalorder %s18, 1
    %p172 = por %p170, %p171
    %p173 = scmp.ne.s32.totalorder %s164, %s165
    %p174 = scmp.eq.s32.totalorder %s18, 0
    %p175 = por %p173, %p174
    %p176 = scmp.ne.s32.totalorder %s164, %s165
    %p177 = scmp.eq.s32.totalorder %s19, 1
    %p178 = por %p176, %p177
    %p180 = scmp.ne.s32.totalorder %s165, %s179
    %p181 = scmp.eq.s32.totalorder %s19, 0
    %p182 = por %p180, %p181
    %s183 = ssub.s32 %s13, %s20
    %p184 = scmp.eq.s32.totalorder %s183, 0
    %s186 = sadd.s32 %s185, 1
    %s187 = scalar_select %p184, %s185, %s186
    %p190 = pneg %p184
    %p191 = scmp.eq.s32.totalorder %s13, 1
    %p192 = por %p190, %p191
    %p193 = scmp.ne.s32.totalorder %s185, %s188
    %p194 = scmp.eq.s32.totalorder %s13, 0
    %p195 = por %p193, %p194
    %p196 = scmp.ne.s32.totalorder %s185, %s188
    %p197 = scmp.eq.s32.totalorder %s18, 1
    %p198 = por %p196, %p197
    %p199 = scmp.ne.s32.totalorder %s188, %s189
    %p200 = scmp.eq.s32.totalorder %s18, 0
    %p201 = por %p199, %p200
    %p202 = scmp.ne.s32.totalorder %s188, %s189
    %p203 = scmp.eq.s32.totalorder %s19, 1
    %p204 = por %p202, %p203
    %p206 = scmp.ne.s32.totalorder %s189, %s205
    %p207 = scmp.eq.s32.totalorder %s19, 0
    %p208 = por %p206, %p207
    %p209 = scmp.le.s32.totalorder 1, %s13
    %p210 = scmp.lt.s32.totalorder %s13, 3
    %p211 = pnand %p209, %p210
    %p212 = pneg %p211
    // Predicated region
    $region9: #{none_decoder_forward.1} parent=5 // pred_check
      _
    $region10: #{none_decoder_forward.1} parent=5 // pred_check_branch
      %214 = sbr.rel (%p211) target = $region12
    $region11: #{none_decoder_forward.1} parent=5 // pred_region
      %s215 = ssub.s32 %s13, 1
      // Predicated region
      $region13: #{none_decoder_forward.1} parent=11 // pred_check
        %p216 = pneg %p112
      $region14: #{none_decoder_forward.1} parent=11 // pred_check_branch
        %218 = sbr.rel (%p216) target = $region16
      $region15: #{none_decoder_forward.1} parent=11 // pred_region
        _
      $region16: #{none_decoder_forward.1} parent=11 // pred_fallthru
        _
      // Predicated region
      $region17: #{none_decoder_forward.1} parent=11 // pred_check
        %p219 = pneg %p133
      $region18: #{none_decoder_forward.1} parent=11 // pred_check_branch
        %221 = sbr.rel (%p219) target = $region20
      $region19: #{none_decoder_forward.1} parent=11 // pred_region
        _
      $region20: #{none_decoder_forward.1} parent=11 // pred_fallthru
        _
      // Predicated region
      $region21: #{none_decoder_forward.1} parent=11 // pred_check
        %p222 = pneg %p154
      $region22: #{none_decoder_forward.1} parent=11 // pred_check_branch
        %224 = sbr.rel (%p222) target = $region24
      $region23: #{none_decoder_forward.1} parent=11 // pred_region
        _
      $region24: #{none_decoder_forward.1} parent=11 // pred_fallthru
        _
      // Predicated region
      $region25: #{none_decoder_forward.1} parent=11 // pred_check
        %p225 = pneg %p175
      $region26: #{none_decoder_forward.1} parent=11 // pred_check_branch
        %227 = sbr.rel (%p225) target = $region28
      $region27: #{none_decoder_forward.1} parent=11 // pred_region
        _
      $region28: #{none_decoder_forward.1} parent=11 // pred_fallthru
        _
    $region12: #{none_decoder_forward.1} parent=5 // pred_fallthru
      _
    %p228 = scmp.lt.s32.totalorder %s13, 2
    // Predicated region
    $region29: #{none_decoder_forward.1} parent=5 // pred_check
      %p229 = pneg %p228
    $region30: #{none_decoder_forward.1} parent=5 // pred_check_branch
      %231 = sbr.rel (%p229) target = $region32
    $region31: #{none_decoder_forward.1} parent=5 // pred_region
      // Predicated region
      $region33: #{none_decoder_forward.1} parent=31 // pred_check
        %p232 = pneg %p33
      $region34: #{none_decoder_forward.1} parent=31 // pred_check_branch
        %234 = sbr.rel (%p232) target = $region36
      $region35: #{none_decoder_forward.1} parent=31 // pred_region
        %p235 = scmp.lt.s32.totalorder %s13, 1
        %s236 = scalar_select %p235, %s13, 1
        %s237 = smul.addr %s236, 8
        %s238 = scalar_lea.vmem %s0, %s237
      $region36: #{none_decoder_forward.1} parent=31 // pred_fallthru
        _
      // Predicated region
      $region37: #{none_decoder_forward.1} parent=31 // pred_check
        %p239 = pneg %p59
      $region38: #{none_decoder_forward.1} parent=31 // pred_check_branch
        %241 = sbr.rel (%p239) target = $region40
      $region39: #{none_decoder_forward.1} parent=31 // pred_region
        %p242 = scmp.lt.s32.totalorder %s13, 1
        %s243 = scalar_select %p242, %s13, 1
        %s244 = smul.addr %s243, 8
        %s245 = scalar_lea.vmem %s1, %s244
      $region40: #{none_decoder_forward.1} parent=31 // pred_fallthru
        _
      // Predicated region
      $region41: #{none_decoder_forward.1} parent=31 // pred_check
        %p246 = pneg %p85
      $region42: #{none_decoder_forward.1} parent=31 // pred_check_branch
        %248 = sbr.rel (%p246) target = $region44
      $region43: #{none_decoder_forward.1} parent=31 // pred_region
        %p249 = scmp.lt.s32.totalorder %s13, 1
        %s250 = scalar_select %p249, %s13, 1
        %s251 = smul.addr %s250, 8
        %s252 = scalar_lea.vmem %s2, %s251
      $region44: #{none_decoder_forward.1} parent=31 // pred_fallthru
        _
    $region32: #{none_decoder_forward.1} parent=5 // pred_fallthru
      _
    %p253 = scmp.le.s32.totalorder 1, %s13
    %p254 = scmp.lt.s32.totalorder %s13, 3
    %p255 = pnand %p253, %p254
    %p256 = pneg %p255
    // Predicated region
    $region45: #{none_decoder_forward.1} parent=5 // pred_check
      _
    $region46: #{none_decoder_forward.1} parent=5 // pred_check_branch
      %258 = sbr.rel (%p255) target = $region48
    $region47: #{none_decoder_forward.1} parent=5 // pred_region
      %s259 = ssub.s32 %s13, 1
      %p260 = scmp.lt.s32.totalorder %s18, 1
      %s261 = scalar_select %p260, %s18, 1
      %s262 = smul.addr %s261, 8
      %s263 = scalar_lea.vmem %s0, %s262
      %p264 = pneg %p39
      %p265 = pneg %p36
      %p266 = scmp.lt.s32.totalorder %s18, 1
      %s267 = scalar_select %p266, %s18, 1
      %s268 = smul.addr %s267, 8
      %s269 = scalar_lea.vmem %s1, %s268
      %p270 = pneg %p65
      %p271 = pneg %p62
      %p272 = scmp.lt.s32.totalorder %s18, 1
      %s273 = scalar_select %p272, %s18, 1
      %s274 = smul.addr %s273, 8
      %s275 = scalar_lea.vmem %s2, %s274
      %p276 = pneg %p91
      %p277 = pneg %p88
      %p278 = pneg %p112
      %p279 = pneg %p109
      %p280 = pneg %p133
      %p281 = pneg %p130
      %p282 = pneg %p154
      %p283 = pneg %p151
      %p284 = pneg %p175
      %p285 = pneg %p172
      %p286 = pneg %p201
      %p287 = pneg %p198
      %p288 = scmp.lt.s32.totalorder %s18, 1
      %s289 = scalar_select %p288, %s18, 1
      %s290 = smul.addr %s289, 8
      %s291 = scalar_lea.vmem %s7, %s290
      %p292 = scmp.lt.s32.totalorder %s18, 1
      %s293 = scalar_select %p292, %s18, 1
      %s294 = smul.addr %s293, 8
      %s295 = scalar_lea.vmem %s0, %s294
      %p296 = scmp.lt.s32.totalorder %s18, 1
      %s297 = scalar_select %p296, %s18, 1
      %s298 = smul.addr %s297, 8
      %s299 = scalar_lea.vmem %s1, %s298
      %p300 = scmp.lt.s32.totalorder %s18, 1
      %s301 = scalar_select %p300, %s18, 1
      %s302 = smul.addr %s301, 8
      %s303 = scalar_lea.vmem %s2, %s302
      %p304 = scmp.lt.s32.totalorder %s18, 1
      %s305 = scalar_select %p304, %s18, 1
      %s306 = smul.addr %s305, 8
      %s307 = scalar_lea.vmem %s7, %s306
      %v308 = vld [vmem:[%s295] sm:$0xff]
      %v309 = vld [vmem:[%s3] sm:$0xff]
      %v310 = vld [vmem:[%s3 + $0x8] sm:$0xff]
      %v311 = vld [vmem:[%s3 + $0x10] sm:$0xff]
      %v312 = vld [vmem:[%s3 + $0x18] sm:$0xff]
      %v313 = vld [vmem:[%s299] sm:$0xff]
      %v314 = vld [vmem:[%s4] sm:$0xff]
      %v315 = vld [vmem:[%s4 + $0x8] sm:$0xff]
      %v316 = vld [vmem:[%s4 + $0x10] sm:$0xff]
      %v317 = vld [vmem:[%s4 + $0x18] sm:$0xff]
      %vm318 = vcmask 261120
      %v320 = vsel %vm318, %v313, 0
      %322 = vmatprep.subr.mxu0 0.0
      %323 = vmatpush1.msra.mxu0 %v314
      %324 = vmatprep.subr.mxu0 0.0
      %325 = vmatpush1.msra.mxu0 %v315
      %326 = vmatprep.subr.mxu0 0.0
      %327 = vmatpush1.msra.mxu0 %v316
      %328 = vmatprep.subr.mxu0 0.0
      %329 = vmatpush1.msra.mxu0 %v317
      %330 = vmatprep.subr.mxu0 0.0
      %331 = vmatpush1.msra.mxu0 0.0
      %332 = vmatprep.subr.mxu0 0.0
      %333 = vmatpush1.msra.mxu0 0.0
      %334 = vmatprep.subr.mxu0 0.0
      %335 = vmatpush1.msra.mxu0 0.0
      %336 = vmatprep.subr.mxu0 0.0
      %337 = vmatpush1.msra.mxu0 0.0
      %338 = vmatprep.subr.mxu0 0.0
      %339 = vmatpush1.msra.mxu0 0.0
      %340 = vmatprep.subr.mxu0 0.0
      %341 = vmatpush1.msra.mxu0 0.0
      %342 = vmatprep.subr.mxu0 0.0
      %343 = vmatpush1.msra.mxu0 0.0
      %344 = vmatprep.subr.mxu0 0.0
      %345 = vmatpush1.msra.mxu0 0.0
      %346 = vmatprep.subr.mxu0 0.0
      %347 = vmatpush1.msra.mxu0 0.0
      %348 = vmatprep.subr.mxu0 0.0
      %349 = vmatpush1.msra.mxu0 0.0
      %350 = vmatprep.subr.mxu0 0.0
      %351 = vmatpush1.msra.mxu0 0.0
      %352 = vmatprep.subr.mxu0 0.0
      %353 = vmatpush1.msra.mxu0 0.0
      %354 = vmatprep.subr.mxu0 0.0
      %355 = vmatpush1.msra.mxu0 0.0
      %356 = vmatprep.subr.mxu0 0.0
      %357 = vmatpush1.msra.mxu0 0.0
      %358 = vmatprep.subr.mxu0 0.0
      %359 = vmatpush1.msra.mxu0 0.0
      %360 = vmatprep.subr.mxu0 0.0
      %361 = vmatpush1.msra.mxu0 0.0
      %362 = vmatprep.subr.mxu0 0.0
      %363 = vmatpush1.msra.mxu0 0.0
      %364 = vmatprep.subr.mxu0 0.0
      %365 = vmatpush1.msra.mxu0 0.0
      %366 = vmatprep.subr.mxu0 0.0
      %367 = vmatpush1.msra.mxu0 0.0
      %368 = vmatprep.subr.mxu0 0.0
      %369 = vmatpush1.msra.mxu0 0.0
      %370 = vmatprep.subr.mxu0 0.0
      %371 = vmatpush1.msra.mxu0 0.0
      %372 = vmatprep.subr.mxu0 0.0
      %373 = vmatpush1.msra.mxu0 0.0
      %374 = vmatprep.subr.mxu0 0.0
      %375 = vmatpush1.msra.mxu0 0.0
      %376 = vmatprep.subr.mxu0 0.0
      %377 = vmatpush1.msra.mxu0 0.0
      %378 = vmatprep.subr.mxu0 0.0
      %379 = vmatpush1.msra.mxu0 0.0
      %380 = vmatprep.subr.mxu0 0.0
      %381 = vmatpush1.msra.mxu0 0.0
      %382 = vmatprep.subr.mxu0 0.0
      %383 = vmatpush1.msra.mxu0 0.0
      %384 = vmatprep.subr.mxu0 0.0
      %385 = vmatpush1.msra.mxu0 0.0
      %386 = vmatprep.mubr.f32.mxu0 0.0
      %387 = vmatmul.mubr.f32.gmra.mrb[0].mxu0 %v320
      %v388 = vpop.f32.mrb[0].mxu0
      %v389 = vadd.f32 0.0, %v388
      %v390 = vpop.f32.mrb[0].mxu0
      %391 = vdwg.mxu0
      %v393 = vsel %vm318, %v308, 0
      %395 = vmatprep.subr.mxu0 0.0
      %396 = vmatpush1.msra.mxu0 %v309
      %397 = vmatprep.subr.mxu0 0.0
      %398 = vmatpush1.msra.mxu0 %v310
      %399 = vmatprep.subr.mxu0 0.0
      %400 = vmatpush1.msra.mxu0 %v311
      %401 = vmatprep.subr.mxu0 0.0
      %402 = vmatpush1.msra.mxu0 %v312
      %403 = vmatprep.subr.mxu0 0.0
      %404 = vmatpush1.msra.mxu0 0.0
      %405 = vmatprep.subr.mxu0 0.0
      %406 = vmatpush1.msra.mxu0 0.0
      %407 = vmatprep.subr.mxu0 0.0
      %408 = vmatpush1.msra.mxu0 0.0
      %409 = vmatprep.subr.mxu0 0.0
      %410 = vmatpush1.msra.mxu0 0.0
      %411 = vmatprep.subr.mxu0 0.0
      %412 = vmatpush1.msra.mxu0 0.0
      %413 = vmatprep.subr.mxu0 0.0
      %414 = vmatpush1.msra.mxu0 0.0
      %415 = vmatprep.subr.mxu0 0.0
      %416 = vmatpush1.msra.mxu0 0.0
      %417 = vmatprep.subr.mxu0 0.0
      %418 = vmatpush1.msra.mxu0 0.0
      %419 = vmatprep.subr.mxu0 0.0
      %420 = vmatpush1.msra.mxu0 0.0
      %421 = vmatprep.subr.mxu0 0.0
      %422 = vmatpush1.msra.mxu0 0.0
      %423 = vmatprep.subr.mxu0 0.0
      %424 = vmatpush1.msra.mxu0 0.0
      %425 = vmatprep.subr.mxu0 0.0
      %426 = vmatpush1.msra.mxu0 0.0
      %427 = vmatprep.subr.mxu0 0.0
      %428 = vmatpush1.msra.mxu0 0.0
      %429 = vmatprep.subr.mxu0 0.0
      %430 = vmatpush1.msra.mxu0 0.0
      %431 = vmatprep.subr.mxu0 0.0
      %432 = vmatpush1.msra.mxu0 0.0
      %433 = vmatprep.subr.mxu0 0.0
      %434 = vmatpush1.msra.mxu0 0.0
      %435 = vmatprep.subr.mxu0 0.0
      %436 = vmatpush1.msra.mxu0 0.0
      %437 = vmatprep.subr.mxu0 0.0
      %438 = vmatpush1.msra.mxu0 0.0
      %439 = vmatprep.subr.mxu0 0.0
      %440 = vmatpush1.msra.mxu0 0.0
      %441 = vmatprep.subr.mxu0 0.0
      %442 = vmatpush1.msra.mxu0 0.0
      %443 = vmatprep.subr.mxu0 0.0
      %444 = vmatpush1.msra.mxu0 0.0
      %445 = vmatprep.subr.mxu0 0.0
      %446 = vmatpush1.msra.mxu0 0.0
      %447 = vmatprep.subr.mxu0 0.0
      %448 = vmatpush1.msra.mxu0 0.0
      %449 = vmatprep.subr.mxu0 0.0
      %450 = vmatpush1.msra.mxu0 0.0
      %451 = vmatprep.subr.mxu0 0.0
      %452 = vmatpush1.msra.mxu0 0.0
      %453 = vmatprep.subr.mxu0 0.0
      %454 = vmatpush1.msra.mxu0 0.0
      %455 = vmatprep.subr.mxu0 0.0
      %456 = vmatpush1.msra.mxu0 0.0
      %457 = vmatprep.subr.mxu0 0.0
      %458 = vmatpush1.msra.mxu0 0.0
      %459 = vmatprep.mubr.f32.mxu0 0.0
      %460 = vmatmul.mubr.f32.gmra.mrb[0].mxu0 %v393
      %v461 = vpop.f32.mrb[0].mxu0
      %v462 = vadd.f32 %v389, %v461
      %v463 = vpop.f32.mrb[0].mxu0
      %464 = vdwg.mxu0
      %v465 = vld [vmem:[%s303] sm:$0xff]
      %v466 = vld [vmem:[%s5] sm:$0xff]
      %v467 = vld [vmem:[%s5 + $0x8] sm:$0xff]
      %v468 = vld [vmem:[%s5 + $0x10] sm:$0xff]
      %v469 = vld [vmem:[%s5 + $0x18] sm:$0xff]
      %v470 = vld [vmem:[%s5 + $0x20] sm:$0xff]
      %v471 = vld [vmem:[%s5 + $0x28] sm:$0xff]
      %v472 = vld [vmem:[%s5 + $0x30] sm:$0xff]
      %v473 = vld [vmem:[%s5 + $0x38] sm:$0xff]
      %v474 = vld [vmem:[%s5 + $0x40] sm:$0xff]
      %v475 = vld [vmem:[%s5 + $0x48] sm:$0xff]
      %v476 = vld [vmem:[%s5 + $0x50] sm:$0xff]
      %v477 = vld [vmem:[%s5 + $0x58] sm:$0xff]
      %v478 = vld [vmem:[%s5 + $0x60] sm:$0xf]
      %vm479 = vcmask 818176
      %v481 = vsel %vm479, %v465, 0
      %vm483 = vcmask 1043456
      %v485 = vsel %vm483, %v478, 0
      %487 = vmatprep.subr.mxu0 0.0
      %488 = vmatpush1.msra.mxu0 %v466
      %489 = vmatprep.subr.mxu0 0.0
      %490 = vmatpush1.msra.mxu0 %v467
      %491 = vmatprep.subr.mxu0 0.0
      %492 = vmatpush1.msra.mxu0 %v468
      %493 = vmatprep.subr.mxu0 0.0
      %494 = vmatpush1.msra.mxu0 %v469
      %495 = vmatprep.subr.mxu0 0.0
      %496 = vmatpush1.msra.mxu0 %v470
      %497 = vmatprep.subr.mxu0 0.0
      %498 = vmatpush1.msra.mxu0 %v471
      %499 = vmatprep.subr.mxu0 0.0
      %500 = vmatpush1.msra.mxu0 %v472
      %501 = vmatprep.subr.mxu0 0.0
      %502 = vmatpush1.msra.mxu0 %v473
      %503 = vmatprep.subr.mxu0 0.0
      %504 = vmatpush1.msra.mxu0 %v474
      %505 = vmatprep.subr.mxu0 0.0
      %506 = vmatpush1.msra.mxu0 %v475
      %507 = vmatprep.subr.mxu0 0.0
      %508 = vmatpush1.msra.mxu0 %v476
      %509 = vmatprep.subr.mxu0 0.0
      %510 = vmatpush1.msra.mxu0 %v477
      %511 = vmatprep.subr.mxu0 0.0
      %512 = vmatpush1.msra.mxu0 %v485
      %513 = vmatprep.subr.mxu0 0.0
      %514 = vmatpush1.msra.mxu0 0.0
      %515 = vmatprep.subr.mxu0 0.0
      %516 = vmatpush1.msra.mxu0 0.0
      %517 = vmatprep.subr.mxu0 0.0
      %518 = vmatpush1.msra.mxu0 0.0
      %519 = vmatprep.subr.mxu0 0.0
      %520 = vmatpush1.msra.mxu0 0.0
      %521 = vmatprep.subr.mxu0 0.0
      %522 = vmatpush1.msra.mxu0 0.0
      %523 = vmatprep.subr.mxu0 0.0
      %524 = vmatpush1.msra.mxu0 0.0
      %525 = vmatprep.subr.mxu0 0.0
      %526 = vmatpush1.msra.mxu0 0.0
      %527 = vmatprep.subr.mxu0 0.0
      %528 = vmatpush1.msra.mxu0 0.0
      %529 = vmatprep.subr.mxu0 0.0
      %530 = vmatpush1.msra.mxu0 0.0
      %531 = vmatprep.subr.mxu0 0.0
      %532 = vmatpush1.msra.mxu0 0.0
      %533 = vmatprep.subr.mxu0 0.0
      %534 = vmatpush1.msra.mxu0 0.0
      %535 = vmatprep.subr.mxu0 0.0
      %536 = vmatpush1.msra.mxu0 0.0
      %537 = vmatprep.subr.mxu0 0.0
      %538 = vmatpush1.msra.mxu0 0.0
      %539 = vmatprep.subr.mxu0 0.0
      %540 = vmatpush1.msra.mxu0 0.0
      %541 = vmatprep.subr.mxu0 0.0
      %542 = vmatpush1.msra.mxu0 0.0
      %543 = vmatprep.subr.mxu0 0.0
      %544 = vmatpush1.msra.mxu0 0.0
      %545 = vmatprep.subr.mxu0 0.0
      %546 = vmatpush1.msra.mxu0 0.0
      %547 = vmatprep.subr.mxu0 0.0
      %548 = vmatpush1.msra.mxu0 0.0
      %549 = vmatprep.subr.mxu0 0.0
      %550 = vmatpush1.msra.mxu0 0.0
      %551 = vmatprep.mubr.f32.mxu0 0.0
      %552 = vmatmul.mubr.f32.gmra.mrb[0].mxu0 %v481
      %v553 = vpop.f32.mrb[0].mxu0
      %v554 = vadd.f32 0.0, %v553
      %v555 = vpop.f32.mrb[0].mxu0
      %556 = vdwg.mxu0
      %v557 = vadd.f32 %v462, %v554
      %v558 = vld [vmem:[%s6] sm:$0x1]
      %v560 = vlaneseq
      %v561 = vshrl.u32 %v560, 7
      %v562 = vsub.s32 0, %v561
      %v563 = vrot.slane %v558, %v562
      %v565 = vadd.f32 %v557, %v563
      %566 = vst [vmem:[%s307] sm:$0xff] %v565
      %p567 = scmp.lt.s32.totalorder %s18, 1
      %s568 = scalar_select %p567, %s18, 1
      %s569 = smul.addr %s568, 8
      %s570 = scalar_lea.vmem %s7, %s569
      // Predicated region
      $region49: #{none_decoder_forward.1} parent=47 // pred_check
        %p571 = pneg %p198
      $region50: #{none_decoder_forward.1} parent=47 // pred_check_branch
        %573 = sbr.rel (%p571) target = $region52
      $region51: #{none_decoder_forward.1} parent=47 // pred_region
        _
      $region52: #{none_decoder_forward.1} parent=47 // pred_fallthru
        _
    $region48: #{none_decoder_forward.1} parent=5 // pred_fallthru
      _
    %p574 = scmp.le.s32.totalorder 2, %s13
    // Predicated region
    $region53: #{none_decoder_forward.1} parent=5 // pred_check
      %p575 = pneg %p574
    $region54: #{none_decoder_forward.1} parent=5 // pred_check_branch
      %577 = sbr.rel (%p575) target = $region56
    $region55: #{none_decoder_forward.1} parent=5 // pred_region
      %s578 = ssub.s32 %s13, 2
      // Predicated region
      $region57: #{none_decoder_forward.1} parent=55 // pred_check
        %p579 = pneg %p204
      $region58: #{none_decoder_forward.1} parent=55 // pred_check_branch
        %581 = sbr.rel (%p579) target = $region60
      $region59: #{none_decoder_forward.1} parent=55 // pred_region
        %p582 = scmp.lt.s32.totalorder %s19, 1
        %s583 = scalar_select %p582, %s19, 1
        %s584 = smul.addr %s583, 8
        %s585 = scalar_lea.vmem %s7, %s584
      $region60: #{none_decoder_forward.1} parent=55 // pred_fallthru
        _
    $region56: #{none_decoder_forward.1} parent=5 // pred_fallthru
      _
  $region6: #{none_decoder_forward.1} parent=0 // loop_footer
    %s17 = sadd.s32 1, %s13
  $region7: #{none_decoder_forward.1} parent=0 // loop_footer_branch
    %12 = sbr.rel target = $region3
  $region8: #{none_decoder_forward.1} parent=0 // loop_exit
    _

</llo_original>
